<compile_context>
chip_gen: v7x
topology: tpu7x:2x2x1
jax: 0.10.0
libtpu: 0.0.40
codegen_flags: <defaults>
</compile_context>

<pallas_src>
import functools
import math

import jax
import jax.numpy as jnp
import numpy as np
from jax.experimental import pallas as pl
from jax.experimental.pallas import tpu as pltpu

# Module config (hidden_size=32, dim_bbox=8) and small test shapes.
B = 2                 # batch
S = 8                 # sequence length (number of boxes)
DEMB = 32             # output embedding dim (= hidden_size)
DIM_BBOX = 8          # coordinates per bbox
DEMB_SUB = DEMB // DIM_BBOX      # per-coordinate embedding dim (= 4)
K = DEMB_SUB // 2                # frequencies per coordinate (= 2)

_HALF_PI = math.pi / 2.0


def pos_emb_2d_kernel(x_ref, freq_ref, phase_ref, out_ref):
    # x_ref     : (B, S_tile*DEMB)  bbox coordinate replicated into its lanes
    # freq_ref  : (1, S_tile*DEMB)  inv_freq value per output lane
    # phase_ref : (1, S_tile*DEMB)  0.0 for sin lanes, pi/2 for cos lanes
    # out_ref   : (B, S_tile*DEMB)  lane-dense output slab
    # Single transcendental per lane: cos(a) == sin(a + pi/2).
    out_ref[...] = jnp.sin(x_ref[...] * freq_ref[...] + phase_ref[...])


@functools.cache
def _lane_constants(s_tile: int):
    """Per-lane (freq, phase) constants for one S-tile. Host-side, cached."""
    inv_freq = 1.0 / (10000.0 ** (np.arange(0.0, DEMB_SUB, 2.0) / DEMB_SUB))  # (K,)
    j = np.arange(DEMB)
    r = j % DEMB_SUB
    freq_lane = inv_freq[r % K]                       # lanes [0,K): sin ; [K,2K): cos
    phase_lane = np.where(r >= K, _HALF_PI, 0.0)
    freq = np.tile(freq_lane, s_tile)[None, :].astype(np.float32)    # (1, s_tile*DEMB)
    phase = np.tile(phase_lane, s_tile)[None, :].astype(np.float32)  # (1, s_tile*DEMB)
    return jnp.asarray(freq), jnp.asarray(phase)


def _choose_s_tile(s: int) -> int:
    """Largest S tile (<= cap) dividing s with s_tile*DEMB a multiple of 128."""
    cap = 1024  # 1024*DEMB lanes * 4 B = 128 KiB per block -> trivially fits VMEM
    if s <= cap:
        return s  # full-extent last dim is always a legal block shape
    for t in range(cap, 0, -1):
        if s % t == 0 and (t * DEMB) % 128 == 0:
            return t
    return s


@jax.jit
def positional_embedding_2d(bbox):
    """bbox: (B, S, DIM_BBOX) float -> (B, S, DEMB) float32."""
    b, s, _ = bbox.shape
    s_tile = _choose_s_tile(s)
    freq, phase = _lane_constants(s_tile)

    # Wrapper-side layout plumbing: output lane j (within DEMB) reads bbox
    # coordinate j // DEMB_SUB, so repeat each coordinate DEMB_SUB times and
    # flatten to a lane-dense (B, S*DEMB) slab.
    x = jnp.repeat(bbox.astype(jnp.float32), DEMB_SUB, axis=-1)   # (B, S, DEMB)
    x = x.reshape(b, s * DEMB)

    blk = s_tile * DEMB
    out_flat = pl.pallas_call(
        pos_emb_2d_kernel,
        out_shape=jax.ShapeDtypeStruct((b, s * DEMB), jnp.float32),
        grid_spec=pltpu.PrefetchScalarGridSpec(
            num_scalar_prefetch=0,
            grid=(s // s_tile,),
            in_specs=[
                pl.BlockSpec((b, blk), lambda i: (0, i)),
                pl.BlockSpec((1, blk), lambda i: (0, 0)),
                pl.BlockSpec((1, blk), lambda i: (0, 0)),
            ],
            out_specs=pl.BlockSpec((b, blk), lambda i: (0, i)),
        ),
        compiler_params=pltpu.CompilerParams(
            dimension_semantics=("parallel",)),
    )(x, freq, phase)
    return out_flat.reshape(b, s, DEMB)


# ---- pure-JAX reference mirroring the PyTorch module 1:1 ----
def _pos_emb_1d_ref(pos_seq):
    inv_freq = 1.0 / (10000.0 ** (jnp.arange(0.0, DEMB_SUB, 2.0) / DEMB_SUB))
    sinusoid = pos_seq[..., None] * inv_freq
    return jnp.concatenate([jnp.sin(sinusoid), jnp.cos(sinusoid)], axis=-1)


def _pos_emb_2d_ref(bbox):
    parts = [_pos_emb_1d_ref(bbox[..., i]) for i in range(DIM_BBOX)]
    return jnp.concatenate(parts, axis=-1)


if __name__ == "__main__":
    key = jax.random.PRNGKey(0)
    # normalized bbox coordinates, as in vldoc (values in [0, 1))
    bbox = jax.random.uniform(key, (B, S, DIM_BBOX), dtype=jnp.float32)

    out = positional_embedding_2d(bbox)
    jax.block_until_ready(out)

    ref = _pos_emb_2d_ref(bbox)
    assert out.shape == (B, S, DEMB)
    if not np.allclose(np.asarray(out), np.asarray(ref), rtol=1e-4, atol=1e-4):
        raise AssertionError("Pallas PositionalEmbedding2D mismatch vs reference")

    print("KERNEL_OK")
</pallas_src>

<mosaic_0001>
module attributes {stable_mosaic.version = 11 : i64} {
  func.func @pos_emb_2d_kernel(%arg0: i32, %arg1: memref<2x256xf32, #tpu.memory_space<vmem>>, %arg2: memref<1x256xf32, #tpu.memory_space<vmem>>, %arg3: memref<1x256xf32, #tpu.memory_space<vmem>>, %arg4: memref<2x256xf32, #tpu.memory_space<vmem>>) attributes {dimension_semantics = [#tpu.dimension_semantics<parallel>], iteration_bounds = array<i64: 1>, scalar_prefetch = 0 : i64, scratch_operands = 0 : i64, tpu.core_type = #tpu.core_type<tc>, window_params = [{transform_indices = @transform_0, window_bounds = array<i64: 2, 256>}, {pipeline_mode = #tpu.pipeline_mode<synchronous>, transform_indices = @transform_1, window_bounds = array<i64: 1, 256>}, {pipeline_mode = #tpu.pipeline_mode<synchronous>, transform_indices = @transform_2, window_bounds = array<i64: 1, 256>}, {transform_indices = @transform_3, window_bounds = array<i64: 2, 256>}]} {
    %c0 = arith.constant 0 : index
    %c0_0 = arith.constant 0 : index
    %0 = vector.load %arg1[%c0, %c0_0] : memref<2x256xf32, #tpu.memory_space<vmem>>, vector<2x256xf32>
    %c0_1 = arith.constant 0 : index
    %c0_2 = arith.constant 0 : index
    %1 = vector.load %arg2[%c0_1, %c0_2] : memref<1x256xf32, #tpu.memory_space<vmem>>, vector<1x256xf32>
    %2 = vector.broadcast %1 : vector<1x256xf32> to vector<2x256xf32>
    %3 = arith.mulf %0, %2 : vector<2x256xf32>
    %c0_3 = arith.constant 0 : index
    %c0_4 = arith.constant 0 : index
    %4 = vector.load %arg3[%c0_3, %c0_4] : memref<1x256xf32, #tpu.memory_space<vmem>>, vector<1x256xf32>
    %5 = vector.broadcast %4 : vector<1x256xf32> to vector<2x256xf32>
    %6 = arith.addf %3, %5 : vector<2x256xf32>
    %7 = math.sin %6 : vector<2x256xf32>
    %c0_5 = arith.constant 0 : index
    %c0_6 = arith.constant 0 : index
    %8 = vector.load %arg4[%c0_5, %c0_6] : memref<2x256xf32, #tpu.memory_space<vmem>>, vector<2x256xf32>
    tpu.vector_store %arg4[%c0_5, %c0_6], %7 {strides = array<i32>} : memref<2x256xf32, #tpu.memory_space<vmem>>, vector<2x256xf32>,
    return
  }
  func.func @transform_0(%arg0: i32) -> (i32, i32) {
    %c0_i32 = arith.constant 0 : i32
    %c0_i32_0 = arith.constant 0 : i32
    return %c0_i32, %arg0 : i32, i32
  }
  func.func @transform_1(%arg0: i32) -> (i32, i32) {
    %c0_i32 = arith.constant 0 : i32
    %c0_i32_0 = arith.constant 0 : i32
    %c0_i32_1 = arith.constant 0 : i32
    return %c0_i32, %c0_i32_0 : i32, i32
  }
  func.func @transform_2(%arg0: i32) -> (i32, i32) {
    %c0_i32 = arith.constant 0 : i32
    %c0_i32_0 = arith.constant 0 : i32
    %c0_i32_1 = arith.constant 0 : i32
    return %c0_i32, %c0_i32_0 : i32, i32
  }
  func.func @transform_3(%arg0: i32) -> (i32, i32) {
    %c0_i32 = arith.constant 0 : i32
    %c0_i32_0 = arith.constant 0 : i32
    return %c0_i32, %arg0 : i32, i32
  }
}

</mosaic_0001>

<llo_original>
// kernel: positional_embedding_2d.1
$region0: #{positional_embedding_2d.1}
  #allocation0 [shape = 'u32[]', space=smem, size = 0x4, offset = 0x4, fixed_abs, tag = 'smem constant byte address 0x4 - core index']
  #allocation1 [shape = 'u32[144,128]{1,0:T(1,128)}', space=vmem, size = 0x12000, scoped, tag = 'internal scratch']
  %s0 = inlined_call_operand.vmem [shape: f32[2,256], index: 0, kind: input, shape index: {}]
  %s1 = inlined_call_operand.vmem [shape: f32[1,256], index: 1, kind: input, shape index: {}]
  %s2 = inlined_call_operand.vmem [shape: f32[1,256], index: 2, kind: input, shape index: {}]
  %s3 = inlined_call_operand.vmem [shape: f32[2,256], index: 3, kind: output, shape index: {}]
  %s4 = sld [smem:[#allocation0]]
  $region22: #{positional_embedding_2d.1} parent=0
    _
  %s6 = ssub.s32 1, %s4
  %s7 = scalar_select 0, %s6, %s4
  // Predicated region
  $region2: #{positional_embedding_2d.1} parent=0 // pred_check
    _
  $region3: #{positional_embedding_2d.1} parent=0 // pred_check_branch
    %9 = sbr.rel (0) target = $region5
  $region4: #{positional_embedding_2d.1} parent=0 // pred_region
    _
  $region5: #{positional_embedding_2d.1} parent=0 // pred_fallthru
    _
  // Predicated region
  $region6: #{positional_embedding_2d.1} parent=0 // pred_check
    _
  $region7: #{positional_embedding_2d.1} parent=0 // pred_check_branch
    %11 = sbr.rel (0) target = $region9
  $region8: #{positional_embedding_2d.1} parent=0 // pred_region
    _
  $region9: #{positional_embedding_2d.1} parent=0 // pred_fallthru
    _
  // Predicated region
  $region10: #{positional_embedding_2d.1} parent=0 // pred_check
    _
  $region11: #{positional_embedding_2d.1} parent=0 // pred_check_branch
    %13 = sbr.rel (0) target = $region13
  $region12: #{positional_embedding_2d.1} parent=0 // pred_region
    _
  $region13: #{positional_embedding_2d.1} parent=0 // pred_fallthru
    _
  %v14 = vld [vmem:[%s0] sm:$0xf]
  %v15 = vld [vmem:[%s1] sm:$0x3]
  %v17 = vlaneseq
  %v18 = vshrl.u32 %v17, 7
  %v19 = vsub.s32 0, %v18
  %v20 = vrot.slane %v15, %v19
  %v21 = vlaneseq
  %v22 = vshrl.u32 %v21, 7
  %v23 = vsub.s32 1, %v22
  %v24 = vrot.slane %v15, %v23
  %v25 = vcombine.low %v20, %v24
  %v27 = vunpack.c.l.s4 1983009808
  %v28 = vunpack.c.0.s8 %v27
  %v29 = vlaneseq
  %v30 = vshrl.u32 %v29, 7
  %v31 = vsub.s32 %v28, %v30
  %v32 = vrot.slane %v25, %v31
  %v34 = vmul.f32 %v14, %v32
  %v35 = vld [vmem:[%s2] sm:$0x3]
  %v37 = vlaneseq
  %v38 = vshrl.u32 %v37, 7
  %v39 = vsub.s32 0, %v38
  %v40 = vrot.slane %v35, %v39
  %v41 = vlaneseq
  %v42 = vshrl.u32 %v41, 7
  %v43 = vsub.s32 1, %v42
  %v44 = vrot.slane %v35, %v43
  %v45 = vcombine.low %v40, %v44
  %v47 = vunpack.c.l.s4 1983009808
  %v48 = vunpack.c.0.s8 %v47
  %v49 = vlaneseq
  %v50 = vshrl.u32 %v49, 7
  %v51 = vsub.s32 %v48, %v50
  %v52 = vrot.slane %v45, %v51
  %v54 = vadd.f32 %v34, %v52
  %v55 = vand.u32 2147483647, %v54
  %vm56 = vcmp.le.f32.partialorder %v55, 0.7853982
  %vm57 = vcmp.lt.s32.totalorder %v54, 0
  %v58 = vand.u32 %v54, 2139095040
  %v59 = vshrl.u32 %v58, 23
  %v60 = vsub.s32 %v59, 127
  %v61 = vand.u32 2147483647, %v54
  %v62 = vand.u32 %v61, 8388607
  %v63 = vor.u32 %v62, 8388608
  %v64 = vsub.s32 0, %v63
  %v65 = vadd.s32 %v60, 1
  %vm66 = vcmp.gt.s32.totalorder %v65, 0
  %v67 = vsel %vm66, %v65, 0
  %v68 = vshrl.u32 %v67, 5
  %v69 = vand.u32 %v67, 31
  %v70 = vsub.s32 32, %v69
  %v71 = vshrl.u32 683565275, %v70
  %v72 = vshll.u32 683565275, %v69
  %v73 = vshrl.u32 2475754826, %v70
  %v74 = vor.u32 %v72, %v73
  %v75 = vshll.u32 2475754826, %v69
  %v76 = vshrl.u32 2131351028, %v70
  %v77 = vor.u32 %v75, %v76
  %v78 = vshll.u32 2131351028, %v69
  %v79 = vshrl.u32 2102212464, %v70
  %v80 = vor.u32 %v78, %v79
  %v81 = vshll.u32 2102212464, %v69
  %v82 = vshrl.u32 920167782, %v70
  %v83 = vor.u32 %v81, %v82
  %v84 = vshll.u32 920167782, %v69
  %v85 = vshrl.u32 1326507024, %v70
  %v86 = vor.u32 %v84, %v85
  %vm87 = vcmp.lt.s32.totalorder %v68, 1
  %vm88 = vcmp.lt.s32.totalorder %v68, 2
  %vm89 = vcmp.lt.s32.totalorder %v68, 3
  %vm90 = vcmp.lt.s32.totalorder %v68, 4
  %v91 = vsel %vm87, %v71, %v74
  %v92 = vsel %vm90, %v80, 2102212464
  %v93 = vsel %vm89, %v77, %v92
  %v94 = vsel %vm88, %v91, %v93
  %v95 = vsel %vm87, %v74, %v77
  %v96 = vsel %vm90, %v83, 920167782
  %v97 = vsel %vm89, %v80, %v96
  %v98 = vsel %vm88, %v95, %v97
  %v99 = vsel %vm87, %v77, %v80
  %v100 = vsel %vm90, %v86, 1326507024
  %v101 = vsel %vm89, %v83, %v100
  %v102 = vsel %vm88, %v99, %v101
  %v103 = vshll.u32 %v63, 8
  %v104 = vmul.u32.u64.compose %v103, %v102
  %v105 = vextract.low.u32 %v104
  %v106 = vextract.high.u32 %v104
  %v107 = vmul.u32.u64.compose %v103, %v98
  %v108 = vextract.low.u32 %v107
  %v109 = vextract.high.u32 %v107
  %v110 = vmul.u32 %v103, %v94
  %v111 = vadd.s32 %v106, %v108
  %vm112 = vc.u32 %v106, %v108
  %v113 = vadd.s32 %v109, 1
  %v114 = vsel %vm112, %v113, %v109
  %v115 = vadd.s32 %v110, %v114
  %v116 = vadd.s32 %v115, 536870912
  %v117 = vshrl.u32 %v116, 30
  %v118 = vshll.u32 %v117, 30
  %v119 = vsub.s32 %v115, %v118
  %vm120 = vcmp.lt.s32.totalorder %v119, 0
  %v121 = vsub.s32 0, %v119
  %v122 = vsel %vm120, %v121, %v119
  %v123 = vclz %v122
  %v124 = vsub.s32 %v123, 2
  %vm125 = vcmp.gt.s32.totalorder 0, %v124
  %v126 = vsel %vm125, 0, %v124
  %v127 = vsub.s32 32, %v126
  %v128 = vshll.u32 %v119, %v126
  %v129 = vshrl.u32 %v111, %v127
  %v130 = vor.u32 %v128, %v129
  %v131 = vsub.s32 4294967266, %v126
  %v132 = vadd.s32 %v131, 127
  %v133 = vshll.u32 %v132, 23
  %v134 = vor.u32 4788187, %v133
  %v135 = vand.u32 2147483647, %v134
  %v137 = vcvt.s32.f32 %v130
  %v138 = vmul.f32 %v137, %v135
  %v139 = vxor.u32 %v138, 2147483648
  %v140 = vsel %vm57, %v139, %v138
  %v141 = vsub.s32 4, %v117
  %v142 = vsel %vm57, %v141, %v117
  %v143 = vsel %vm56, %v54, %v140
  %v144 = vsel %vm56, 0, %v142
  %v145 = vcosq.f32.pop %v143
  %v146 = vsinq.f32.pop %v143
  %vm147 = vweird.f32 %v54
  %v148 = vadd.s32 %v144, 3
  %v149 = vand.u32 %v148, 3
  %vm150 = vcmp.lt.s32.totalorder %v149, 2
  %vm151 = vcmp.eq.s32.totalorder %v149, 0
  %v152 = vxor.u32 %v146, 2147483648
  %v153 = vsel %vm151, %v145, %v152
  %vm154 = vcmp.eq.s32.totalorder %v149, 2
  %v155 = vxor.u32 %v145, 2147483648
  %v156 = vsel %vm154, %v155, %v146
  %v157 = vsel %vm150, %v153, %v156
  %v158 = vsel %vm147, nan, %v157
  %159 = vst [vmem:[%s3] sm:$0xf] %v158
  // Predicated region
  $region14: #{positional_embedding_2d.1} parent=0 // pred_check
    _
  $region15: #{positional_embedding_2d.1} parent=0 // pred_check_branch
    %161 = sbr.rel (0) target = $region17
  $region16: #{positional_embedding_2d.1} parent=0 // pred_region
    _
  $region17: #{positional_embedding_2d.1} parent=0 // pred_fallthru
    _
  // Predicated region
  $region18: #{positional_embedding_2d.1} parent=0 // pred_check
    _
  $region19: #{positional_embedding_2d.1} parent=0 // pred_check_branch
    %163 = sbr.rel (0) target = $region21
  $region20: #{positional_embedding_2d.1} parent=0 // pred_region
    _
  $region21: #{positional_embedding_2d.1} parent=0 // pred_fallthru
    _

</llo_original>
